<compile_context>
chip_gen: v5e
topology: v5e:2x2
jax: 0.10.0
libtpu: 0.0.40
codegen_flags: <defaults>
</compile_context>

<pallas_src>
import jax
import jax.numpy as jnp
from jax.experimental import pallas as pl
from jax.experimental.pallas import tpu as pltpu

NUM_FILTERS = 3
FILTER_SIZES = (2, 2, 2)          # all equal -> packable into one weight slab
KH = FILTER_SIZES[0]              # conv kernel height (2)
HIDDEN = 768                      # hidden_size (fixed by the module)
N_CLASS = 47
NUM_FILTER_TOTAL = NUM_FILTERS * len(FILTER_SIZES)   # 9
NPAD = 128                        # lane-dense padding for 9 features / 47 classes
ROW1_LANE = 64                    # lane offset of the kernel-row-1 filters in wcat


def textcnn_kernel(x_ref, wcat_ref, bconv_ref, wlin_ref, blin_ref, o_ref):
    # x_ref:     [TB, L, H]   bf16
    # wcat_ref:  [H, NPAD]    bf16  lanes 0..8 = kernel-row-0 filters,
    #                               lanes 64..72 = kernel-row-1 filters, rest 0
    # bconv_ref: [1, NPAD]    f32   packed conv biases (padded with 0)
    # wlin_ref:  [NPAD, NPAD] f32   Linear(9,47) weight^T, zero-padded
    # blin_ref:  [1, NPAD]    f32   ones-bias, zero-padded
    # o_ref:     [TB, NPAD]   f32   lane-dense output slab
    TB, L, H = x_ref.shape
    Lw = L - KH + 1                                   # valid conv positions
    rows = TB * L

    x = x_ref[...].reshape(rows, H)                   # leading-dim reshape (free)

    # Single lane-packed bf16 MXU matmul covers both conv kernel rows:
    #   lanes 0..8 -> x[b,l] @ w_row0,  lanes 64..72 -> x[b,l] @ w_row1.
    y = jnp.dot(x, wcat_ref[...], preferred_element_type=jnp.float32)  # [rows, NPAD] f32

    # XLU lane roll: bring the row-1 contribution to lanes 0..8.
    y1 = pltpu.roll(y, shift=NPAD - ROW1_LANE, axis=1)
    # XLU sublane roll: shift it up one time step so row r holds x[b,l+1] @ w_row1.
    # (shift = rows-1 == -1 mod rows; wrapped / cross-batch rows are masked below.)
    y1 = pltpu.roll(y1, shift=rows - 1, axis=0)

    s = (y + y1).reshape(TB, L, NPAD)                 # leading-dim reshape (free)

    # Validity mask at single-vreg size (1, L, 128); broadcast covers TB.
    # Select (not additive -inf) so NaN garbage in padded tail rows that the
    # sublane roll pulled into l = L-1 can never contaminate valid rows.
    l_ids = jax.lax.broadcasted_iota(jnp.int32, (1, L, NPAD), 1)
    s = jnp.where(l_ids < Lw, s, -jnp.inf)

    pooled = jnp.max(s, axis=1)                       # MaxPool2d over time -> [TB, NPAD]
    # Bias + ReLU hoisted after the max (bias time-invariant, ReLU monotone).
    pooled = jnp.maximum(pooled + bconv_ref[...], 0.0)

    out = jnp.dot(pooled, wlin_ref[...], preferred_element_type=jnp.float32)
    o_ref[...] = out + blin_ref[...]                  # lane-dense, unmasked store


def textcnn_forward(x, wcat, bconv, wlin, blin, *, tb=256):
    B, L, H = x.shape
    x = x.astype(jnp.bfloat16)        # DMA'd as bf16: half HBM bytes, MXU-native
    # TB=256: bf16 block = TB*L*H*2B = 3 MiB (6 MiB double-buffered) + ~3 MiB of
    # f32 temporaries -> fits under the 16 MiB default scoped VMEM on v5e and
    # gives >=4 grid steps for B>=1024 (pipelined DMA + v7x megacore sharding).
    TB = min(B, tb)
    grid = (pl.cdiv(B, TB),)

    cost = pl.CostEstimate(
        flops=2 * B * L * H * NPAD + 2 * B * NPAD * NPAD,
        transcendentals=0,
        bytes_accessed=(2 * B * L * H + 2 * H * NPAD
                        + 4 * (2 * NPAD + NPAD * NPAD) + 4 * B * NPAD),
    )

    out_pad = pl.pallas_call(
        textcnn_kernel,
        out_shape=jax.ShapeDtypeStruct((B, NPAD), jnp.float32),
        grid=grid,
        in_specs=[
            pl.BlockSpec((TB, L, H), lambda i: (i, 0, 0)),
            pl.BlockSpec(wcat.shape, lambda i: (0, 0)),
            pl.BlockSpec(bconv.shape, lambda i: (0, 0)),
            pl.BlockSpec(wlin.shape, lambda i: (0, 0)),
            pl.BlockSpec(blin.shape, lambda i: (0, 0)),
        ],
        out_specs=pl.BlockSpec((TB, NPAD), lambda i: (i, 0)),
        compiler_params=pltpu.CompilerParams(
            dimension_semantics=("parallel",)),
        cost_estimate=cost,
    )(x, wcat, bconv, wlin, blin)
    return out_pad[:, :N_CLASS]      # trim the lane padding outside the kernel


def pack_params(conv_w, conv_b, lin_w, lin_bias):
    """Host-side packing of the PyTorch parameters into lane-dense slabs."""
    assert NUM_FILTER_TOTAL <= ROW1_LANE and ROW1_LANE + NUM_FILTER_TOTAL <= NPAD
    # conv_w: [n_sizes, n_filters, KH, H]; feature index c = n_filters*i + ch
    # (matches torch.cat of the permuted pooled outputs in the reference forward).
    w = conv_w.reshape(NUM_FILTER_TOTAL, KH, HIDDEN).transpose(1, 2, 0)  # [KH, H, 9]
    wcat = jnp.zeros((HIDDEN, NPAD), jnp.float32)
    wcat = wcat.at[:, :NUM_FILTER_TOTAL].set(w[0])
    wcat = wcat.at[:, ROW1_LANE:ROW1_LANE + NUM_FILTER_TOTAL].set(w[1])
    wcat = wcat.astype(jnp.bfloat16)                  # bf16 weight slab for the MXU

    bconv = jnp.zeros((1, NPAD), jnp.float32)
    bconv = bconv.at[0, :NUM_FILTER_TOTAL].set(conv_b.reshape(NUM_FILTER_TOTAL))

    wlin = jnp.zeros((NPAD, NPAD), jnp.float32)       # Linear(9, 47, bias=False)
    wlin = wlin.at[:NUM_FILTER_TOTAL, :N_CLASS].set(lin_w.T)

    blin = jnp.zeros((1, NPAD), jnp.float32)          # nn.Parameter(torch.ones([47]))
    blin = blin.at[0, :N_CLASS].set(lin_bias)
    return wcat, bconv, wlin, blin


def textcnn_ref(x, conv_w, conv_b, lin_w, lin_bias):
    """Pure-JAX f32 reference mirroring the PyTorch forward semantics."""
    B, L, H = x.shape
    Lw = L - KH + 1
    w = conv_w.reshape(NUM_FILTER_TOTAL, KH, H)                 # [9, 2, H]
    s = (jnp.einsum("blh,ch->blc", x[:, :Lw, :], w[:, 0, :])
         + jnp.einsum("blh,ch->blc", x[:, 1:, :], w[:, 1, :])
         + conv_b.reshape(NUM_FILTER_TOTAL))
    pooled = jnp.max(jnp.maximum(s, 0.0), axis=1)               # [B, 9]
    return pooled @ lin_w.T + lin_bias


if __name__ == "__main__":
    key = jax.random.PRNGKey(0)
    k_x, k_cw, k_cb, k_lw = jax.random.split(key, 4)

    B = 2
    L = 8          # num_encode_layer
    H = HIDDEN

    x = jax.random.normal(k_x, (B, L, H), dtype=jnp.float32)

    # Conv2d(1, 3, (2, 768)) weights/biases for each of the 3 filter sizes.
    conv_w = jax.random.normal(
        k_cw, (len(FILTER_SIZES), NUM_FILTERS, KH, H), dtype=jnp.float32) * 0.05
    conv_b = jax.random.normal(
        k_cb, (len(FILTER_SIZES), NUM_FILTERS), dtype=jnp.float32) * 0.05
    lin_w = jax.random.normal(
        k_lw, (N_CLASS, NUM_FILTER_TOTAL), dtype=jnp.float32) * 0.1
    lin_bias = jnp.ones((N_CLASS,), dtype=jnp.float32)

    wcat, bconv, wlin, blin = pack_params(conv_w, conv_b, lin_w, lin_bias)

    out = textcnn_forward(x, wcat, bconv, wlin, blin)
    out = jax.block_until_ready(out)

    ref = textcnn_ref(x, conv_w, conv_b, lin_w, lin_bias)
    assert out.shape == (B, N_CLASS), out.shape
    # bf16 matmul operands (f32 accumulation): expect ~1e-2 abs error vs f32 ref.
    assert jnp.allclose(out, ref, atol=3e-2, rtol=3e-2), \
        float(jnp.max(jnp.abs(out - ref)))
    print("KERNEL_OK")
</pallas_src>

<mosaic_0001>
module attributes {stable_mosaic.version = 11 : i64} {
  func.func @textcnn_kernel(%arg0: i32, %arg1: memref<2x8x768xbf16, #tpu.memory_space<vmem>>, %arg2: memref<768x128xbf16, #tpu.memory_space<vmem>>, %arg3: memref<1x128xf32, #tpu.memory_space<vmem>>, %arg4: memref<128x128xf32, #tpu.memory_space<vmem>>, %arg5: memref<1x128xf32, #tpu.memory_space<vmem>>, %arg6: memref<2x128xf32, #tpu.memory_space<vmem>>) attributes {dimension_semantics = [#tpu.dimension_semantics<parallel>], iteration_bounds = array<i64: 1>, scalar_prefetch = 0 : i64, scratch_operands = 0 : i64, tpu.core_type = #tpu.core_type<tc>, window_params = [{transform_indices = @transform_0, window_bounds = array<i64: 2, 8, 768>}, {pipeline_mode = #tpu.pipeline_mode<synchronous>, transform_indices = @transform_1, window_bounds = array<i64: 768, 128>}, {pipeline_mode = #tpu.pipeline_mode<synchronous>, transform_indices = @transform_2, window_bounds = array<i64: 1, 128>}, {pipeline_mode = #tpu.pipeline_mode<synchronous>, transform_indices = @transform_3, window_bounds = array<i64: 128, 128>}, {pipeline_mode = #tpu.pipeline_mode<synchronous>, transform_indices = @transform_4, window_bounds = array<i64: 1, 128>}, {transform_indices = @transform_5, window_bounds = array<i64: 2, 128>}]} {
    %c0 = arith.constant 0 : index
    %c0_0 = arith.constant 0 : index
    %c0_1 = arith.constant 0 : index
    %0 = vector.load %arg1[%c0, %c0_0, %c0_1] : memref<2x8x768xbf16, #tpu.memory_space<vmem>>, vector<2x8x768xbf16>
    %1 = vector.shape_cast %0 : vector<2x8x768xbf16> to vector<16x768xbf16>
    %c0_2 = arith.constant 0 : index
    %c0_3 = arith.constant 0 : index
    %2 = vector.load %arg2[%c0_2, %c0_3] : memref<768x128xbf16, #tpu.memory_space<vmem>>, vector<768x128xbf16>
    %cst = arith.constant dense<0.000000e+00> : vector<16x128xf32>
    %3 = tpu.matmul %1, %2, %cst {dimension_numbers = #tpu.dot_dimension_numbers<[1], [0], [0], [1], [0, 0, 1, 1], [], []>} : vector<16x768xbf16>, vector<768x128xbf16>, vector<16x128xf32> -> vector<16x128xf32>
    %c64_i32 = arith.constant 64 : i32
    %4 = tpu.dynamic_rotate %3 by %c64_i32 dim 1 : vector<16x128xf32>, i32 -> vector<16x128xf32>
    %c15_i32 = arith.constant 15 : i32
    %5 = tpu.dynamic_rotate %4 by %c15_i32 dim 0 : vector<16x128xf32>, i32 -> vector<16x128xf32>
    %6 = arith.addf %3, %5 : vector<16x128xf32>
    %7 = vector.shape_cast %6 : vector<16x128xf32> to vector<2x8x128xf32>
    %8 = tpu.iota {dimensions = array<i32: 1>} : vector<1x8x128xi32>
    %c7_i32 = arith.constant 7 : i32
    %9 = vector.broadcast %c7_i32 : i32 to vector<1x8x128xi32>
    %10 = arith.cmpi slt, %8, %9 : vector<1x8x128xi32>
    %cst_4 = arith.constant 0xFF800000 : f32
    %11 = vector.shape_cast %10 : vector<1x8x128xi1> to vector<1x8x128xi1>
    %12 = vector.broadcast %11 : vector<1x8x128xi1> to vector<2x8x128xi1>
    %13 = vector.broadcast %cst_4 : f32 to vector<2x8x128xf32>
    %14 = arith.select %12, %7, %13 : vector<2x8x128xi1>, vector<2x8x128xf32>
    %cst_5 = arith.constant dense<0xFF800000> : vector<2x128xf32>
    %15 = vector.multi_reduction <maximumf>, %14, %cst_5 [1] : vector<2x8x128xf32> to vector<2x128xf32>
    %c0_6 = arith.constant 0 : index
    %c0_7 = arith.constant 0 : index
    %16 = vector.load %arg3[%c0_6, %c0_7] : memref<1x128xf32, #tpu.memory_space<vmem>>, vector<1x128xf32>
    %17 = vector.broadcast %16 : vector<1x128xf32> to vector<2x128xf32>
    %18 = arith.addf %15, %17 : vector<2x128xf32>
    %cst_8 = arith.constant 0.000000e+00 : f32
    %19 = vector.broadcast %cst_8 : f32 to vector<2x128xf32>
    %20 = arith.maximumf %18, %19 : vector<2x128xf32>
    %c0_9 = arith.constant 0 : index
    %c0_10 = arith.constant 0 : index
    %21 = vector.load %arg4[%c0_9, %c0_10] : memref<128x128xf32, #tpu.memory_space<vmem>>, vector<128x128xf32>
    %cst_11 = arith.constant dense<0.000000e+00> : vector<2x128xf32>
    %22 = tpu.matmul %20, %21, %cst_11 {dimension_numbers = #tpu.dot_dimension_numbers<[1], [0], [0], [1], [0, 0, 1, 1], [], []>} : vector<2x128xf32>, vector<128x128xf32>, vector<2x128xf32> -> vector<2x128xf32>
    %c0_12 = arith.constant 0 : index
    %c0_13 = arith.constant 0 : index
    %23 = vector.load %arg5[%c0_12, %c0_13] : memref<1x128xf32, #tpu.memory_space<vmem>>, vector<1x128xf32>
    %24 = vector.broadcast %23 : vector<1x128xf32> to vector<2x128xf32>
    %25 = arith.addf %22, %24 : vector<2x128xf32>
    %c0_14 = arith.constant 0 : index
    %c0_15 = arith.constant 0 : index
    %26 = vector.load %arg6[%c0_14, %c0_15] : memref<2x128xf32, #tpu.memory_space<vmem>>, vector<2x128xf32>
    tpu.vector_store %arg6[%c0_14, %c0_15], %25 {strides = array<i32>} : memref<2x128xf32, #tpu.memory_space<vmem>>, vector<2x128xf32>,
    return
  }
  func.func @transform_0(%arg0: i32) -> (i32, i32, i32) {
    %c0_i32 = arith.constant 0 : i32
    %c0_i32_0 = arith.constant 0 : i32
    %c0_i32_1 = arith.constant 0 : i32
    return %arg0, %c0_i32, %c0_i32_0 : i32, i32, i32
  }
  func.func @transform_1(%arg0: i32) -> (i32, i32) {
    %c0_i32 = arith.constant 0 : i32
    %c0_i32_0 = arith.constant 0 : i32
    %c0_i32_1 = arith.constant 0 : i32
    return %c0_i32, %c0_i32_0 : i32, i32
  }
  func.func @transform_2(%arg0: i32) -> (i32, i32) {
    %c0_i32 = arith.constant 0 : i32
    %c0_i32_0 = arith.constant 0 : i32
    %c0_i32_1 = arith.constant 0 : i32
    return %c0_i32, %c0_i32_0 : i32, i32
  }
  func.func @transform_3(%arg0: i32) -> (i32, i32) {
    %c0_i32 = arith.constant 0 : i32
    %c0_i32_0 = arith.constant 0 : i32
    %c0_i32_1 = arith.constant 0 : i32
    return %c0_i32, %c0_i32_0 : i32, i32
  }
  func.func @transform_4(%arg0: i32) -> (i32, i32) {
    %c0_i32 = arith.constant 0 : i32
    %c0_i32_0 = arith.constant 0 : i32
    %c0_i32_1 = arith.constant 0 : i32
    return %c0_i32, %c0_i32_0 : i32, i32
  }
  func.func @transform_5(%arg0: i32) -> (i32, i32) {
    %c0_i32 = arith.constant 0 : i32
    %c0_i32_0 = arith.constant 0 : i32
    return %arg0, %c0_i32 : i32, i32
  }
}

</mosaic_0001>

<llo_original>
// kernel: tpu_custom_call.1
$region0: #{tpu_custom_call.1}
  #allocation0 [shape = 'u32[]', space=smem, size = 0x4, offset = 0x4, fixed_abs, tag = 'smem constant byte address 0x4 - core index']
  #allocation1 [shape = 'u32[72,128]{1,0:T(1,128)}', space=vmem, size = 0x9000, scoped, tag = 'internal scratch']
  %s0 = inlined_call_operand.hbm [shape: bf16[2,8,768], index: 0, kind: input, shape index: {}]
  %s1 = inlined_call_operand.hbm [shape: bf16[768,128], index: 1, kind: input, shape index: {}]
  %s2 = inlined_call_operand.vmem [shape: f32[1,128], index: 2, kind: input, shape index: {}]
  %s3 = inlined_call_operand.hbm [shape: f32[128,128], index: 3, kind: input, shape index: {}]
  %s4 = inlined_call_operand.vmem [shape: f32[1,128], index: 4, kind: input, shape index: {}]
  %s5 = inlined_call_operand.hbm [shape: f32[2,128], index: 5, kind: output, shape index: {}]
  %s6 = sld [smem:[#allocation0]]
  $region42: #{tpu_custom_call.1} parent=0
    _
  %s8 = ssub.s32 1, %s6
  %s9 = scalar_select 0, %s8, %s6
  $region1: #{tpu_custom_call.1} parent=0
    #allocation2 [shape = 'u8[24576]{0}', space=vmem, size = 0x6000, scoped, tag = 'input window, operand 0, single buffered']
    #allocation3 [shape = 's32[1]{0}', space=sflag, size = 0x4, scoped, tag = 'scoped memory for tpu_custom_call.1']
    #allocation4 [shape = 's32[1]{0}', space=sflag, size = 0x4, scoped, tag = 'scoped memory for tpu_custom_call.1']
    #allocation5 [shape = 'u8[196608]{0}', space=vmem, size = 0x30000, scoped, tag = 'input window, operand 1, single buffered']
    #allocation6 [shape = 's32[1]{0}', space=sflag, size = 0x4, scoped, tag = 'scoped memory for tpu_custom_call.1']
    #allocation7 [shape = 'u8[65536]{0}', space=vmem, size = 0x10000, scoped, tag = 'input window, operand 3, single buffered']
    #allocation8 [shape = 'u8[1024]{0}', space=vmem, size = 0x400, scoped, tag = 'output window, operand 0, single buffered']
    %10 = vsyncpa [#allocation3], 0
    %11 = vsyncpa [#allocation6], 0
    %12 = vsyncpa [#allocation4], 0
    // Predicated region
    $region2: #{tpu_custom_call.1} parent=1 // pred_check
      _
    $region3: #{tpu_custom_call.1} parent=1 // pred_check_branch
      %14 = sbr.rel (0) target = $region5
    $region4: #{tpu_custom_call.1} parent=1 // pred_region
      %16 = vsyncadd [#allocation3], 0
      %s17 = sshll.u32 %s0, 4
      %s18 = int_to_ptr.hbm [resolvable:$true] %s17
      %s19 = sshll.u32 [#allocation2], 4
      %s20 = int_to_ptr.vmem [resolvable:$true] %s19
      %25 = dma.hbm_to_vmem [thread:$0]  %s18, 768, %s20, [#allocation3], 384, 384, 24
    $region5: #{tpu_custom_call.1} parent=1 // pred_fallthru
      _
    // Predicated region
    $region6: #{tpu_custom_call.1} parent=1 // pred_check
      _
    $region7: #{tpu_custom_call.1} parent=1 // pred_check_branch
      %27 = sbr.rel (0) target = $region9
    $region8: #{tpu_custom_call.1} parent=1 // pred_region
      %29 = vsyncadd [#allocation6], 0
      %s30 = sshll.u32 %s1, 4
      %s31 = int_to_ptr.hbm [resolvable:$true] %s30
      %s32 = sshll.u32 [#allocation5], 4
      %s33 = int_to_ptr.vmem [resolvable:$true] %s32
      %38 = dma.hbm_to_vmem [thread:$0]  %s31, 6144, %s33, [#allocation6], 64, 64, 4
    $region9: #{tpu_custom_call.1} parent=1 // pred_fallthru
      _
    // Predicated region
    $region10: #{tpu_custom_call.1} parent=1 // pred_check
      _
    $region11: #{tpu_custom_call.1} parent=1 // pred_check_branch
      %40 = sbr.rel (0) target = $region13
    $region12: #{tpu_custom_call.1} parent=1 // pred_region
      _
    $region13: #{tpu_custom_call.1} parent=1 // pred_fallthru
      _
    // Predicated region
    $region14: #{tpu_custom_call.1} parent=1 // pred_check
      _
    $region15: #{tpu_custom_call.1} parent=1 // pred_check_branch
      %42 = sbr.rel (0) target = $region17
    $region16: #{tpu_custom_call.1} parent=1 // pred_region
      %44 = vsyncadd [#allocation6], 0
      %s45 = sshll.u32 %s3, 4
      %s46 = int_to_ptr.hbm [resolvable:$true] %s45
      %s47 = sshll.u32 [#allocation7], 4
      %s48 = int_to_ptr.vmem [resolvable:$true] %s47
      %53 = dma.hbm_to_vmem [thread:$0]  %s46, 2048, %s48, [#allocation6], 128, 128, 8
    $region17: #{tpu_custom_call.1} parent=1 // pred_fallthru
      _
    // Predicated region
    $region18: #{tpu_custom_call.1} parent=1 // pred_check
      _
    $region19: #{tpu_custom_call.1} parent=1 // pred_check_branch
      %55 = sbr.rel (0) target = $region21
    $region20: #{tpu_custom_call.1} parent=1 // pred_region
      _
    $region21: #{tpu_custom_call.1} parent=1 // pred_fallthru
      _
    // Predicated region
    $region22: #{tpu_custom_call.1} parent=1 // pred_check
      _
    $region23: #{tpu_custom_call.1} parent=1 // pred_check_branch
      %57 = sbr.rel (0) target = $region25
    $region24: #{tpu_custom_call.1} parent=1 // pred_region
      %59 = dma.done [#allocation3], 768
    $region25: #{tpu_custom_call.1} parent=1 // pred_fallthru
      _
    // Predicated region
    $region26: #{tpu_custom_call.1} parent=1 // pred_check
      _
    $region27: #{tpu_custom_call.1} parent=1 // pred_check_branch
      %61 = sbr.rel (0) target = $region29
    $region28: #{tpu_custom_call.1} parent=1 // pred_region
      %63 = dma.done [#allocation6], 6144
    $region29: #{tpu_custom_call.1} parent=1 // pred_fallthru
      _
    // Predicated region
    $region30: #{tpu_custom_call.1} parent=1 // pred_check
      _
    $region31: #{tpu_custom_call.1} parent=1 // pred_check_branch
      %65 = sbr.rel (0) target = $region33
    $region32: #{tpu_custom_call.1} parent=1 // pred_region
      %67 = dma.done [#allocation6], 2048
    $region33: #{tpu_custom_call.1} parent=1 // pred_fallthru
      _
    %v68 = vld [vmem:[#allocation2] sm:$0xff]
    %v69 = vld [vmem:[#allocation2 + $0x8] sm:$0xff]
    %v70 = vld [vmem:[#allocation2 + $0x10] sm:$0xff]
    %v71 = vld [vmem:[#allocation2 + $0x18] sm:$0xff]
    %v72 = vld [vmem:[#allocation2 + $0x20] sm:$0xff]
    %v73 = vld [vmem:[#allocation2 + $0x28] sm:$0xff]
    %v74 = vld [vmem:[#allocation5] sm:$0xf]
    %v75 = vld [vmem:[#allocation5 + $0x4] sm:$0xf]
    %v76 = vld [vmem:[#allocation5 + $0x8] sm:$0xf]
    %v77 = vld [vmem:[#allocation5 + $0xc] sm:$0xf]
    %v78 = vld [vmem:[#allocation5 + $0x10] sm:$0xf]
    %v79 = vld [vmem:[#allocation5 + $0x14] sm:$0xf]
    %v80 = vld [vmem:[#allocation5 + $0x18] sm:$0xf]
    %v81 = vld [vmem:[#allocation5 + $0x1c] sm:$0xf]
    %v82 = vld [vmem:[#allocation5 + $0x20] sm:$0xf]
    %v83 = vld [vmem:[#allocation5 + $0x24] sm:$0xf]
    %v84 = vld [vmem:[#allocation5 + $0x28] sm:$0xf]
    %v85 = vld [vmem:[#allocation5 + $0x2c] sm:$0xf]
    %v86 = vld [vmem:[#allocation5 + $0x30] sm:$0xf]
    %v87 = vld [vmem:[#allocation5 + $0x34] sm:$0xf]
    %v88 = vld [vmem:[#allocation5 + $0x38] sm:$0xf]
    %v89 = vld [vmem:[#allocation5 + $0x3c] sm:$0xf]
    %v90 = vld [vmem:[#allocation5 + $0x40] sm:$0xf]
    %v91 = vld [vmem:[#allocation5 + $0x44] sm:$0xf]
    %v92 = vld [vmem:[#allocation5 + $0x48] sm:$0xf]
    %v93 = vld [vmem:[#allocation5 + $0x4c] sm:$0xf]
    %v94 = vld [vmem:[#allocation5 + $0x50] sm:$0xf]
    %v95 = vld [vmem:[#allocation5 + $0x54] sm:$0xf]
    %v96 = vld [vmem:[#allocation5 + $0x58] sm:$0xf]
    %v97 = vld [vmem:[#allocation5 + $0x5c] sm:$0xf]
    %v98 = vld [vmem:[#allocation5 + $0x60] sm:$0xf]
    %v99 = vld [vmem:[#allocation5 + $0x64] sm:$0xf]
    %v100 = vld [vmem:[#allocation5 + $0x68] sm:$0xf]
    %v101 = vld [vmem:[#allocation5 + $0x6c] sm:$0xf]
    %v102 = vld [vmem:[#allocation5 + $0x70] sm:$0xf]
    %v103 = vld [vmem:[#allocation5 + $0x74] sm:$0xf]
    %v104 = vld [vmem:[#allocation5 + $0x78] sm:$0xf]
    %v105 = vld [vmem:[#allocation5 + $0x7c] sm:$0xf]
    %v106 = vld [vmem:[#allocation5 + $0x80] sm:$0xf]
    %v107 = vld [vmem:[#allocation5 + $0x84] sm:$0xf]
    %v108 = vld [vmem:[#allocation5 + $0x88] sm:$0xf]
    %v109 = vld [vmem:[#allocation5 + $0x8c] sm:$0xf]
    %v110 = vld [vmem:[#allocation5 + $0x90] sm:$0xf]
    %v111 = vld [vmem:[#allocation5 + $0x94] sm:$0xf]
    %v112 = vld [vmem:[#allocation5 + $0x98] sm:$0xf]
    %v113 = vld [vmem:[#allocation5 + $0x9c] sm:$0xf]
    %v114 = vld [vmem:[#allocation5 + $0xa0] sm:$0xf]
    %v115 = vld [vmem:[#allocation5 + $0xa4] sm:$0xf]
    %v116 = vld [vmem:[#allocation5 + $0xa8] sm:$0xf]
    %v117 = vld [vmem:[#allocation5 + $0xac] sm:$0xf]
    %v118 = vld [vmem:[#allocation5 + $0xb0] sm:$0xf]
    %v119 = vld [vmem:[#allocation5 + $0xb4] sm:$0xf]
    %v120 = vld [vmem:[#allocation5 + $0xb8] sm:$0xf]
    %v121 = vld [vmem:[#allocation5 + $0xbc] sm:$0xf]
    %v122 = vld [vmem:[#allocation5 + $0xc0] sm:$0xf]
    %v123 = vld [vmem:[#allocation5 + $0xc4] sm:$0xf]
    %v124 = vld [vmem:[#allocation5 + $0xc8] sm:$0xf]
    %v125 = vld [vmem:[#allocation5 + $0xcc] sm:$0xf]
    %v126 = vld [vmem:[#allocation5 + $0xd0] sm:$0xf]
    %v127 = vld [vmem:[#allocation5 + $0xd4] sm:$0xf]
    %v128 = vld [vmem:[#allocation5 + $0xd8] sm:$0xf]
    %v129 = vld [vmem:[#allocation5 + $0xdc] sm:$0xf]
    %v130 = vld [vmem:[#allocation5 + $0xe0] sm:$0xf]
    %v131 = vld [vmem:[#allocation5 + $0xe4] sm:$0xf]
    %v132 = vld [vmem:[#allocation5 + $0xe8] sm:$0xf]
    %v133 = vld [vmem:[#allocation5 + $0xec] sm:$0xf]
    %v134 = vld [vmem:[#allocation5 + $0xf0] sm:$0xf]
    %v135 = vld [vmem:[#allocation5 + $0xf4] sm:$0xf]
    %v136 = vld [vmem:[#allocation5 + $0xf8] sm:$0xf]
    %v137 = vld [vmem:[#allocation5 + $0xfc] sm:$0xf]
    %v138 = vld [vmem:[#allocation5 + $0x100] sm:$0xf]
    %v139 = vld [vmem:[#allocation5 + $0x104] sm:$0xf]
    %v140 = vld [vmem:[#allocation5 + $0x108] sm:$0xf]
    %v141 = vld [vmem:[#allocation5 + $0x10c] sm:$0xf]
    %v142 = vld [vmem:[#allocation5 + $0x110] sm:$0xf]
    %v143 = vld [vmem:[#allocation5 + $0x114] sm:$0xf]
    %v144 = vld [vmem:[#allocation5 + $0x118] sm:$0xf]
    %v145 = vld [vmem:[#allocation5 + $0x11c] sm:$0xf]
    %v146 = vld [vmem:[#allocation5 + $0x120] sm:$0xf]
    %v147 = vld [vmem:[#allocation5 + $0x124] sm:$0xf]
    %v148 = vld [vmem:[#allocation5 + $0x128] sm:$0xf]
    %v149 = vld [vmem:[#allocation5 + $0x12c] sm:$0xf]
    %v150 = vld [vmem:[#allocation5 + $0x130] sm:$0xf]
    %v151 = vld [vmem:[#allocation5 + $0x134] sm:$0xf]
    %v152 = vld [vmem:[#allocation5 + $0x138] sm:$0xf]
    %v153 = vld [vmem:[#allocation5 + $0x13c] sm:$0xf]
    %v154 = vld [vmem:[#allocation5 + $0x140] sm:$0xf]
    %v155 = vld [vmem:[#allocation5 + $0x144] sm:$0xf]
    %v156 = vld [vmem:[#allocation5 + $0x148] sm:$0xf]
    %v157 = vld [vmem:[#allocation5 + $0x14c] sm:$0xf]
    %v158 = vld [vmem:[#allocation5 + $0x150] sm:$0xf]
    %v159 = vld [vmem:[#allocation5 + $0x154] sm:$0xf]
    %v160 = vld [vmem:[#allocation5 + $0x158] sm:$0xf]
    %v161 = vld [vmem:[#allocation5 + $0x15c] sm:$0xf]
    %v162 = vld [vmem:[#allocation5 + $0x160] sm:$0xf]
    %v163 = vld [vmem:[#allocation5 + $0x164] sm:$0xf]
    %v164 = vld [vmem:[#allocation5 + $0x168] sm:$0xf]
    %v165 = vld [vmem:[#allocation5 + $0x16c] sm:$0xf]
    %v166 = vld [vmem:[#allocation5 + $0x170] sm:$0xf]
    %v167 = vld [vmem:[#allocation5 + $0x174] sm:$0xf]
    %v168 = vld [vmem:[#allocation5 + $0x178] sm:$0xf]
    %v169 = vld [vmem:[#allocation5 + $0x17c] sm:$0xf]
    %v176 = vunpack.c.l.b16 %v68
    %v177 = vunpack.c.h.b16 %v68
    %v178 = vunpack.c.l.b16 %v69
    %v179 = vunpack.c.h.b16 %v69
    %v180 = vunpack.c.l.b16 %v70
    %v181 = vunpack.c.h.b16 %v70
    %v182 = vunpack.c.l.b16 %v71
    %v183 = vunpack.c.h.b16 %v71
    %v184 = vunpack.c.l.b16 %v72
    %v185 = vunpack.c.h.b16 %v72
    %v186 = vunpack.c.l.b16 %v73
    %v187 = vunpack.c.h.b16 %v73
    %v188 = vpack.c.b16 %v182, %v176
    %v189 = vpack.c.b16 %v183, %v177
    %v190 = vpack.c.b16 %v184, %v178
    %v191 = vpack.c.b16 %v185, %v179
    %v192 = vpack.c.b16 %v186, %v180
    %v193 = vpack.c.b16 %v187, %v181
    %v296 = vunpack.c.l.b16 %v74
    %v297 = vunpack.c.l.b16 %v75
    %v298 = vunpack.c.l.b16 %v76
    %v299 = vunpack.c.l.b16 %v77
    %v300 = vunpack.c.l.b16 %v78
    %v301 = vunpack.c.l.b16 %v79
    %v302 = vunpack.c.l.b16 %v80
    %v303 = vunpack.c.l.b16 %v81
    %v304 = vunpack.c.l.b16 %v82
    %v305 = vunpack.c.l.b16 %v83
    %v306 = vunpack.c.l.b16 %v84
    %v307 = vunpack.c.l.b16 %v85
    %v308 = vunpack.c.l.b16 %v86
    %v309 = vunpack.c.l.b16 %v87
    %v310 = vunpack.c.l.b16 %v88
    %v311 = vunpack.c.l.b16 %v89
    %v312 = vunpack.c.l.b16 %v90
    %v313 = vunpack.c.l.b16 %v91
    %v314 = vunpack.c.l.b16 %v92
    %v315 = vunpack.c.l.b16 %v93
    %v316 = vunpack.c.l.b16 %v94
    %v317 = vunpack.c.l.b16 %v95
    %v318 = vunpack.c.l.b16 %v96
    %v319 = vunpack.c.l.b16 %v97
    %v320 = vunpack.c.l.b16 %v98
    %v321 = vunpack.c.l.b16 %v99
    %v322 = vunpack.c.l.b16 %v100
    %v323 = vunpack.c.l.b16 %v101
    %v324 = vunpack.c.l.b16 %v102
    %v325 = vunpack.c.l.b16 %v103
    %v326 = vunpack.c.l.b16 %v104
    %v327 = vunpack.c.l.b16 %v105
    %v328 = vunpack.c.l.b16 %v106
    %v329 = vunpack.c.l.b16 %v107
    %v330 = vunpack.c.l.b16 %v108
    %v331 = vunpack.c.l.b16 %v109
    %v332 = vunpack.c.l.b16 %v110
    %v333 = vunpack.c.l.b16 %v111
    %v334 = vunpack.c.l.b16 %v112
    %v335 = vunpack.c.l.b16 %v113
    %v336 = vunpack.c.l.b16 %v114
    %v337 = vunpack.c.l.b16 %v115
    %v338 = vunpack.c.l.b16 %v116
    %v339 = vunpack.c.l.b16 %v117
    %v340 = vunpack.c.l.b16 %v118
    %v341 = vunpack.c.l.b16 %v119
    %v342 = vunpack.c.l.b16 %v120
    %v343 = vunpack.c.l.b16 %v121
    %v344 = vunpack.c.l.b16 %v122
    %v345 = vunpack.c.l.b16 %v123
    %v346 = vunpack.c.l.b16 %v124
    %v347 = vunpack.c.l.b16 %v125
    %v348 = vunpack.c.l.b16 %v126
    %v349 = vunpack.c.l.b16 %v127
    %v350 = vunpack.c.l.b16 %v128
    %v351 = vunpack.c.l.b16 %v129
    %v352 = vunpack.c.l.b16 %v130
    %v353 = vunpack.c.l.b16 %v131
    %v354 = vunpack.c.l.b16 %v132
    %v355 = vunpack.c.l.b16 %v133
    %v356 = vunpack.c.l.b16 %v134
    %v357 = vunpack.c.l.b16 %v135
    %v358 = vunpack.c.l.b16 %v136
    %v359 = vunpack.c.l.b16 %v137
    %v360 = vunpack.c.l.b16 %v138
    %v361 = vunpack.c.l.b16 %v139
    %v362 = vunpack.c.l.b16 %v140
    %v363 = vunpack.c.l.b16 %v141
    %v364 = vunpack.c.l.b16 %v142
    %v365 = vunpack.c.l.b16 %v143
    %v366 = vunpack.c.l.b16 %v144
    %v367 = vunpack.c.l.b16 %v145
    %v368 = vunpack.c.l.b16 %v146
    %v369 = vunpack.c.l.b16 %v147
    %v370 = vunpack.c.l.b16 %v148
    %v371 = vunpack.c.l.b16 %v149
    %v372 = vunpack.c.l.b16 %v150
    %v373 = vunpack.c.l.b16 %v151
    %v374 = vunpack.c.l.b16 %v152
    %v375 = vunpack.c.l.b16 %v153
    %v376 = vunpack.c.l.b16 %v154
    %v377 = vunpack.c.l.b16 %v155
    %v378 = vunpack.c.l.b16 %v156
    %v379 = vunpack.c.l.b16 %v157
    %v380 = vunpack.c.l.b16 %v158
    %v381 = vunpack.c.l.b16 %v159
    %v382 = vunpack.c.l.b16 %v160
    %v383 = vunpack.c.l.b16 %v161
    %v384 = vunpack.c.l.b16 %v162
    %v385 = vunpack.c.l.b16 %v163
    %v386 = vunpack.c.l.b16 %v164
    %v387 = vunpack.c.l.b16 %v165
    %v388 = vunpack.c.l.b16 %v166
    %v389 = vunpack.c.l.b16 %v167
    %v390 = vunpack.c.l.b16 %v168
    %v391 = vunpack.c.l.b16 %v169
    %v392 = vpack.c.b16 %v297, %v296
    %v393 = vpack.c.b16 %v299, %v298
    %v394 = vpack.c.b16 %v301, %v300
    %v395 = vpack.c.b16 %v303, %v302
    %v396 = vpack.c.b16 %v305, %v304
    %v397 = vpack.c.b16 %v307, %v306
    %v398 = vpack.c.b16 %v309, %v308
    %v399 = vpack.c.b16 %v311, %v310
    %v400 = vpack.c.b16 %v313, %v312
    %v401 = vpack.c.b16 %v315, %v314
    %v402 = vpack.c.b16 %v317, %v316
    %v403 = vpack.c.b16 %v319, %v318
    %v404 = vpack.c.b16 %v321, %v320
    %v405 = vpack.c.b16 %v323, %v322
    %v406 = vpack.c.b16 %v325, %v324
    %v407 = vpack.c.b16 %v327, %v326
    %v408 = vpack.c.b16 %v329, %v328
    %v409 = vpack.c.b16 %v331, %v330
    %v410 = vpack.c.b16 %v333, %v332
    %v411 = vpack.c.b16 %v335, %v334
    %v412 = vpack.c.b16 %v337, %v336
    %v413 = vpack.c.b16 %v339, %v338
    %v414 = vpack.c.b16 %v341, %v340
    %v415 = vpack.c.b16 %v343, %v342
    %v416 = vpack.c.b16 %v345, %v344
    %v417 = vpack.c.b16 %v347, %v346
    %v418 = vpack.c.b16 %v349, %v348
    %v419 = vpack.c.b16 %v351, %v350
    %v420 = vpack.c.b16 %v353, %v352
    %v421 = vpack.c.b16 %v355, %v354
    %v422 = vpack.c.b16 %v357, %v356
    %v423 = vpack.c.b16 %v359, %v358
    %v424 = vpack.c.b16 %v361, %v360
    %v425 = vpack.c.b16 %v363, %v362
    %v426 = vpack.c.b16 %v365, %v364
    %v427 = vpack.c.b16 %v367, %v366
    %v428 = vpack.c.b16 %v369, %v368
    %v429 = vpack.c.b16 %v371, %v370
    %v430 = vpack.c.b16 %v373, %v372
    %v431 = vpack.c.b16 %v375, %v374
    %v432 = vpack.c.b16 %v377, %v376
    %v433 = vpack.c.b16 %v379, %v378
    %v434 = vpack.c.b16 %v381, %v380
    %v435 = vpack.c.b16 %v383, %v382
    %v436 = vpack.c.b16 %v385, %v384
    %v437 = vpack.c.b16 %v387, %v386
    %v438 = vpack.c.b16 %v389, %v388
    %v439 = vpack.c.b16 %v391, %v390
    %488 = vmatpush.bf16.msra.mxu0 %v399
    %489 = vmatpush.bf16.msra.mxu0 %v398
    %490 = vmatpush.bf16.msra.mxu0 %v397
    %491 = vmatpush.bf16.msra.mxu0 %v396
    %492 = vmatpush.bf16.msra.mxu0 %v395
    %493 = vmatpush.bf16.msra.mxu0 %v394
    %494 = vmatpush.bf16.msra.mxu0 %v393
    %495 = vmatpush.bf16.msra.mxu0 %v392
    %496 = vmatmul.bf16.gmra.mxu0 %v188
    %v497 = vpop.f32.mrf.mxu0
    %v498 = vadd.f32 0.0, %v497
    %v499 = vpop.f32.mrf.mxu0
    %v500 = vadd.f32 0.0, %v499
    %501 = vdwg.mxu0
    %502 = vmatpush.bf16.msra.mxu0 %v407
    %503 = vmatpush.bf16.msra.mxu0 %v406
    %504 = vmatpush.bf16.msra.mxu0 %v405
    %505 = vmatpush.bf16.msra.mxu0 %v404
    %506 = vmatpush.bf16.msra.mxu0 %v403
    %507 = vmatpush.bf16.msra.mxu0 %v402
    %508 = vmatpush.bf16.msra.mxu0 %v401
    %509 = vmatpush.bf16.msra.mxu0 %v400
    %510 = vmatmul.bf16.gmra.mxu0 %v189
    %v511 = vpop.f32.mrf.mxu0
    %v512 = vadd.f32 %v498, %v511
    %v513 = vpop.f32.mrf.mxu0
    %v514 = vadd.f32 %v500, %v513
    %515 = vdwg.mxu0
    %516 = vmatpush.bf16.msra.mxu0 %v415
    %517 = vmatpush.bf16.msra.mxu0 %v414
    %518 = vmatpush.bf16.msra.mxu0 %v413
    %519 = vmatpush.bf16.msra.mxu0 %v412
    %520 = vmatpush.bf16.msra.mxu0 %v411
    %521 = vmatpush.bf16.msra.mxu0 %v410
    %522 = vmatpush.bf16.msra.mxu0 %v409
    %523 = vmatpush.bf16.msra.mxu0 %v408
    %524 = vmatmul.bf16.gmra.mxu0 %v190
    %v525 = vpop.f32.mrf.mxu0
    %v526 = vadd.f32 %v512, %v525
    %v527 = vpop.f32.mrf.mxu0
    %v528 = vadd.f32 %v514, %v527
    %529 = vdwg.mxu0
    %530 = vmatpush.bf16.msra.mxu0 %v423
    %531 = vmatpush.bf16.msra.mxu0 %v422
    %532 = vmatpush.bf16.msra.mxu0 %v421
    %533 = vmatpush.bf16.msra.mxu0 %v420
    %534 = vmatpush.bf16.msra.mxu0 %v419
    %535 = vmatpush.bf16.msra.mxu0 %v418
    %536 = vmatpush.bf16.msra.mxu0 %v417
    %537 = vmatpush.bf16.msra.mxu0 %v416
    %538 = vmatmul.bf16.gmra.mxu0 %v191
    %v539 = vpop.f32.mrf.mxu0
    %v540 = vadd.f32 %v526, %v539
    %v541 = vpop.f32.mrf.mxu0
    %v542 = vadd.f32 %v528, %v541
    %543 = vdwg.mxu0
    %544 = vmatpush.bf16.msra.mxu0 %v431
    %545 = vmatpush.bf16.msra.mxu0 %v430
    %546 = vmatpush.bf16.msra.mxu0 %v429
    %547 = vmatpush.bf16.msra.mxu0 %v428
    %548 = vmatpush.bf16.msra.mxu0 %v427
    %549 = vmatpush.bf16.msra.mxu0 %v426
    %550 = vmatpush.bf16.msra.mxu0 %v425
    %551 = vmatpush.bf16.msra.mxu0 %v424
    %552 = vmatmul.bf16.gmra.mxu0 %v192
    %v553 = vpop.f32.mrf.mxu0
    %v554 = vadd.f32 %v540, %v553
    %v555 = vpop.f32.mrf.mxu0
    %v556 = vadd.f32 %v542, %v555
    %557 = vdwg.mxu0
    %558 = vmatpush.bf16.msra.mxu0 %v439
    %559 = vmatpush.bf16.msra.mxu0 %v438
    %560 = vmatpush.bf16.msra.mxu0 %v437
    %561 = vmatpush.bf16.msra.mxu0 %v436
    %562 = vmatpush.bf16.msra.mxu0 %v435
    %563 = vmatpush.bf16.msra.mxu0 %v434
    %564 = vmatpush.bf16.msra.mxu0 %v433
    %565 = vmatpush.bf16.msra.mxu0 %v432
    %566 = vmatmul.bf16.gmra.mxu0 %v193
    %v567 = vpop.f32.mrf.mxu0
    %v568 = vadd.f32 %v554, %v567
    %v569 = vpop.f32.mrf.mxu0
    %v570 = vadd.f32 %v556, %v569
    %571 = vdwg.mxu0
    %572 = vrot.lane.b32.xlu0 %v568, 64
    %v573 = vpop.permute.xlu0 %572
    %574 = vrot.lane.b32.xlu0 %v570, 64
    %v575 = vpop.permute.xlu0 %574
    %v576 = vrot.slane %v573, 1
    %v577 = vrot.slane %v575, 1
    %v578 = vlaneseq
    %v579 = vshrl.u32 %v578, 7
    %vm580 = vcmp.lt.s32.totalorder %v579, 7
    %v581 = vsel %vm580, %v576, %v577
    %v582 = vsel %vm580, %v577, %v576
    %v583 = vadd.f32 %v568, %v581
    %v584 = vadd.f32 %v570, %v582
    %v585 = vsel %vm580, 1, 0
    %vm586 = vcmp.eq.s32.totalorder %v585, 1
    %v587 = vsel %vm586, %v583, -inf
    %v588 = vsel %vm586, %v584, -inf
    %v589 = vrot.slane %v587, 4
    %v590 = vmax.f32 %v587, %v589
    %v591 = vrot.slane %v590, 2
    %v592 = vmax.f32 %v590, %v591
    %v593 = vrot.slane %v592, 1
    %v594 = vmax.f32 %v592, %v593
    %v595 = vrot.slane %v588, 4
    %v596 = vmax.f32 %v588, %v595
    %v597 = vrot.slane %v596, 2
    %v598 = vmax.f32 %v596, %v597
    %v599 = vrot.slane %v598, 1
    %v600 = vmax.f32 %v598, %v599
    %v601 = vld [vmem:[%s2] sm:$0x1]
    %v603 = vperm.slane %v601, 0
    %v605 = vadd.f32 %v594, %v603
    %v606 = vadd.f32 %v600, %v603
    %v607 = vmax.f32 %v605, 0.0
    %v608 = vmax.f32 %v606, 0.0
    %v609 = vld [vmem:[#allocation7] sm:$0xff]
    %v610 = vld [vmem:[#allocation7 + $0x8] sm:$0xff]
    %v611 = vld [vmem:[#allocation7 + $0x10] sm:$0xff]
    %v612 = vld [vmem:[#allocation7 + $0x18] sm:$0xff]
    %v613 = vld [vmem:[#allocation7 + $0x20] sm:$0xff]
    %v614 = vld [vmem:[#allocation7 + $0x28] sm:$0xff]
    %v615 = vld [vmem:[#allocation7 + $0x30] sm:$0xff]
    %v616 = vld [vmem:[#allocation7 + $0x38] sm:$0xff]
    %v617 = vld [vmem:[#allocation7 + $0x40] sm:$0xff]
    %v618 = vld [vmem:[#allocation7 + $0x48] sm:$0xff]
    %v619 = vld [vmem:[#allocation7 + $0x50] sm:$0xff]
    %v620 = vld [vmem:[#allocation7 + $0x58] sm:$0xff]
    %v621 = vld [vmem:[#allocation7 + $0x60] sm:$0xff]
    %v622 = vld [vmem:[#allocation7 + $0x68] sm:$0xff]
    %v623 = vld [vmem:[#allocation7 + $0x70] sm:$0xff]
    %v624 = vld [vmem:[#allocation7 + $0x78] sm:$0xff]
    %v625 = vld [vmem:[%s4] sm:$0x1]
    %v627 = vperm.slane %v625, 0
    %v631 = vrot.slane %v608, 7
    %vm632 = vcmask 1041409
    %v633 = vsel %vm632, %v631, %v607
    %635 = vmatpush.msra.mxu0 %v624
    %636 = vmatpush.msra.mxu0 %v623
    %637 = vmatpush.msra.mxu0 %v622
    %638 = vmatpush.msra.mxu0 %v621
    %639 = vmatpush.msra.mxu0 %v620
    %640 = vmatpush.msra.mxu0 %v619
    %641 = vmatpush.msra.mxu0 %v618
    %642 = vmatpush.msra.mxu0 %v617
    %643 = vmatpush.msra.mxu0 %v616
    %644 = vmatpush.msra.mxu0 %v615
    %645 = vmatpush.msra.mxu0 %v614
    %646 = vmatpush.msra.mxu0 %v613
    %647 = vmatpush.msra.mxu0 %v612
    %648 = vmatpush.msra.mxu0 %v611
    %649 = vmatpush.msra.mxu0 %v610
    %650 = vmatpush.msra.mxu0 %v609
    %651 = vmatmul.f32.gmra.mxu0 %v633
    %v652 = vpop.f32.mrf.mxu0
    %v653 = vadd.f32 %v627, %v652
    %654 = vdwg.mxu0
    %655 = vst [vmem:[#allocation8] sm:$0x3] %v653
    // Predicated region
    $region34: #{tpu_custom_call.1} parent=1 // pred_check
      _
    $region35: #{tpu_custom_call.1} parent=1 // pred_check_branch
      %657 = sbr.rel (0) target = $region37
    $region36: #{tpu_custom_call.1} parent=1 // pred_region
      %659 = vsyncadd [#allocation4], 0
      %s661 = sshll.u32 [#allocation8], 4
      %s662 = int_to_ptr.vmem [resolvable:$true] %s661
      %s663 = sshll.u32 %s5, 4
      %s664 = int_to_ptr.hbm [resolvable:$true] %s663
      %666 = dma.vmem_to_hbm [thread:$0]  %s662, 32, %s664, [#allocation4]
    $region37: #{tpu_custom_call.1} parent=1 // pred_fallthru
      _
    // Predicated region
    $region38: #{tpu_custom_call.1} parent=1 // pred_check
      _
    $region39: #{tpu_custom_call.1} parent=1 // pred_check_branch
      %668 = sbr.rel (0) target = $region41
    $region40: #{tpu_custom_call.1} parent=1 // pred_region
      %670 = dma.done [#allocation4], 32
    $region41: #{tpu_custom_call.1} parent=1 // pred_fallthru
      _
    %671 = vsyncpa [#allocation3], 1
    %672 = vsyncpa [#allocation6], 1
    %673 = vsyncpa [#allocation4], 1

</llo_original>
